<compile_context>
chip_gen: v7x
topology: tpu7x:2x2x1
jax: 0.10.0
libtpu: 0.0.40
codegen_flags: <defaults>
</compile_context>

<pallas_src>
import functools
import numpy as np
import jax
import jax.numpy as jnp
from jax.experimental import pallas as pl
from jax.experimental.pallas import tpu as pltpu

# Tile targets (sweep at real scale; tk up to 512 for large K).
TM, TN, TK = 256, 256, 256
KSIZE = 3  # LocalRNN window size


def _tile_rows(dim, target=TM):
    """Largest power-of-two tile <= target dividing dim (sublane dim, mult of 8)."""
    t = target
    while t >= 8:
        if dim % t == 0:
            return t
        t //= 2
    return dim


def _tile_lanes(dim, target=TN):
    """Largest power-of-two tile <= target dividing dim (lane dim, mult of 128)."""
    t = target
    while t >= 128:
        if dim % t == 0:
            return t
        t //= 2
    return dim


# ----------------------------------------------------------------------------
# Tiled matmul (+ bias + optional activation)
# ----------------------------------------------------------------------------
def _linear_kernel(x_ref, w_ref, b_ref, o_ref, acc_ref, *, activation):
    @pl.when(pl.program_id(2) == 0)
    def _init():
        acc_ref[...] = jnp.zeros_like(acc_ref)

    acc_ref[...] += jnp.dot(x_ref[...], w_ref[...],
                            preferred_element_type=jnp.float32)

    @pl.when(pl.program_id(2) == pl.num_programs(2) - 1)
    def _finalize():
        y = acc_ref[...] + b_ref[...]
        if activation == "relu":
            y = jnp.maximum(y, 0.0)
        elif activation == "sigmoid":
            y = jax.nn.sigmoid(y)
        o_ref[...] = y.astype(o_ref.dtype)


def linear(x, w, b=None, activation=None, use_bf16=True):
    """[M,K] @ [K,N] + b with optional fused relu/sigmoid.  f32 output."""
    M, K = x.shape
    N = w.shape[1]
    tm, tn, tk = _tile_rows(M, TM), _tile_lanes(N, TN), _tile_lanes(K, TK)
    if b is None:
        b = jnp.zeros((N,), jnp.float32)
    b2 = b.reshape(1, N).astype(jnp.float32)
    if use_bf16:
        x = x.astype(jnp.bfloat16)
        w = w.astype(jnp.bfloat16)
    return pl.pallas_call(
        functools.partial(_linear_kernel, activation=activation),
        out_shape=jax.ShapeDtypeStruct((M, N), jnp.float32),
        grid=(M // tm, N // tn, K // tk),
        in_specs=[
            pl.BlockSpec((tm, tk), lambda i, j, k: (i, k)),
            pl.BlockSpec((tk, tn), lambda i, j, k: (k, j)),
            pl.BlockSpec((1, tn), lambda i, j, k: (0, j)),
        ],
        out_specs=pl.BlockSpec((tm, tn), lambda i, j, k: (i, j)),
        scratch_shapes=[pltpu.VMEM((tm, tn), jnp.float32)],
        compiler_params=pltpu.CompilerParams(
            dimension_semantics=("parallel", "parallel", "arbitrary")),
    )(x, w, b2)


# ----------------------------------------------------------------------------
# Tiled matmul with fused bias + residual add + nn.LayerNorm epilogue
# ----------------------------------------------------------------------------
def _linear_res_ln_kernel(x_ref, w_ref, b_ref, r_ref, o_ref, acc_ref, *, eps):
    @pl.when(pl.program_id(1) == 0)
    def _init():
        acc_ref[...] = jnp.zeros_like(acc_ref)

    acc_ref[...] += jnp.dot(x_ref[...], w_ref[...],
                            preferred_element_type=jnp.float32)

    @pl.when(pl.program_id(1) == pl.num_programs(1) - 1)
    def _finalize():
        y = acc_ref[...] + b_ref[...] + r_ref[...]
        mu = jnp.mean(y, axis=-1, keepdims=True)
        var = jnp.mean(jnp.square(y - mu), axis=-1, keepdims=True)
        o_ref[...] = ((y - mu) * jax.lax.rsqrt(var + eps)).astype(o_ref.dtype)


def linear_res_ln(x, w, b, residual, eps=1e-5, use_bf16=True):
    """LayerNorm(x @ w + b + residual) with gamma=1, beta=0 (nn.LayerNorm).
    N is not tiled so the norm sees the full feature dimension."""
    M, K = x.shape
    N = w.shape[1]
    tm, tk = _tile_rows(M, TM), _tile_lanes(K, TK)
    b2 = b.reshape(1, N).astype(jnp.float32)
    residual = residual.astype(jnp.float32)
    if use_bf16:
        x = x.astype(jnp.bfloat16)
        w = w.astype(jnp.bfloat16)
    return pl.pallas_call(
        functools.partial(_linear_res_ln_kernel, eps=eps),
        out_shape=jax.ShapeDtypeStruct((M, N), jnp.float32),
        grid=(M // tm, K // tk),
        in_specs=[
            pl.BlockSpec((tm, tk), lambda i, k: (i, k)),
            pl.BlockSpec((tk, N), lambda i, k: (k, 0)),
            pl.BlockSpec((1, N), lambda i, k: (0, 0)),
            pl.BlockSpec((tm, N), lambda i, k: (i, 0)),
        ],
        out_specs=pl.BlockSpec((tm, N), lambda i, k: (i, 0)),
        scratch_shapes=[pltpu.VMEM((tm, N), jnp.float32)],
        compiler_params=pltpu.CompilerParams(
            dimension_semantics=("parallel", "arbitrary")),
    )(x, w, b2, residual)


# ----------------------------------------------------------------------------
# Custom LayerNorm (std-based, eps added to std) fused with GLU
# ----------------------------------------------------------------------------
def _ln_glu_kernel(x_ref, o_ref, *, eps, half):
    x = x_ref[...]
    mu = jnp.mean(x, axis=-1, keepdims=True)
    d = x - mu
    var = jnp.sum(d * d, axis=-1, keepdims=True) / (x.shape[-1] - 1)  # unbiased
    y = d / (jnp.sqrt(var) + eps)          # (x - mean) / (std + eps)
    o_ref[...] = y[:, :half] * jax.nn.sigmoid(y[:, half:])


def ln_glu(x2d, eps=1e-6):
    M, E = x2d.shape
    half = E // 2
    tm = _tile_rows(M)
    return pl.pallas_call(
        functools.partial(_ln_glu_kernel, eps=eps, half=half),
        out_shape=jax.ShapeDtypeStruct((M, half), jnp.float32),
        grid=(M // tm,),
        in_specs=[pl.BlockSpec((tm, E), lambda i: (i, 0))],
        out_specs=pl.BlockSpec((tm, half), lambda i: (i, 0)),
        compiler_params=pltpu.CompilerParams(dimension_semantics=("parallel",)),
    )(x2d)


# ----------------------------------------------------------------------------
# Sigmoid-gate combine (ct*relu(a) + (1-ct)*relu(b)) + custom LayerNorm
# ----------------------------------------------------------------------------
def _gate_ln_kernel(ct_ref, a_ref, b_ref, o_ref, *, eps):
    ct = ct_ref[...]
    y = ct * jnp.maximum(a_ref[...], 0.0) + (1.0 - ct) * jnp.maximum(b_ref[...], 0.0)
    mu = jnp.mean(y, axis=-1, keepdims=True)
    d = y - mu
    var = jnp.sum(d * d, axis=-1, keepdims=True) / (y.shape[-1] - 1)  # unbiased
    o_ref[...] = d / (jnp.sqrt(var) + eps)


def gate_ln(ct, img, attr, eps=1e-6):
    M, E = img.shape
    tm = _tile_rows(M)
    spec = pl.BlockSpec((tm, E), lambda i: (i, 0))
    return pl.pallas_call(
        functools.partial(_gate_ln_kernel, eps=eps),
        out_shape=jax.ShapeDtypeStruct((M, E), jnp.float32),
        grid=(M // tm,),
        in_specs=[spec, spec, spec],
        out_specs=spec,
        compiler_params=pltpu.CompilerParams(dimension_semantics=("parallel",)),
    )(ct, img, attr)


# ----------------------------------------------------------------------------
# LSTM cell (PyTorch gate order i, f, g, o)
# ----------------------------------------------------------------------------
def _lstm_cell_kernel(gx_ref, gh_ref, c_ref, h_ref, co_ref, *, hidden):
    g = gx_ref[...] + gh_ref[...]
    i = jax.nn.sigmoid(g[:, :hidden])
    f = jax.nn.sigmoid(g[:, hidden:2 * hidden])
    cc = jnp.tanh(g[:, 2 * hidden:3 * hidden])
    o = jax.nn.sigmoid(g[:, 3 * hidden:])
    c_new = f * c_ref[...] + i * cc
    h_ref[...] = o * jnp.tanh(c_new)
    co_ref[...] = c_new


def lstm_cell(gx, gh, c):
    M, E4 = gx.shape
    E = E4 // 4
    tm = _tile_rows(M)
    big = pl.BlockSpec((tm, E4), lambda i: (i, 0))
    small = pl.BlockSpec((tm, E), lambda i: (i, 0))
    return pl.pallas_call(
        functools.partial(_lstm_cell_kernel, hidden=E),
        out_shape=(jax.ShapeDtypeStruct((M, E), jnp.float32),
                   jax.ShapeDtypeStruct((M, E), jnp.float32)),
        grid=(M // tm,),
        in_specs=[big, big, small],
        out_specs=(small, small),
        compiler_params=pltpu.CompilerParams(dimension_semantics=("parallel",)),
    )(gx, gh, c)


# ----------------------------------------------------------------------------
# Head-batched scaled dot-product attention (mask shared across heads, int8)
# ----------------------------------------------------------------------------
def _attention_kernel(q_ref, k_ref, v_ref, m_ref, ctx_ref, attn_ref, *, scale):
    q = q_ref[0]                           # [H, Lq, dk]  (bf16)
    k = k_ref[0]                           # [H, Lk, dk]
    v = v_ref[0]
    m = m_ref[0].astype(jnp.float32)       # [Lq, Lk]     (1.0 == masked)
    s = jnp.einsum("hqd,hkd->hqk", q, k,
                   preferred_element_type=jnp.float32) * scale
    s = jnp.where((m > 0.5)[None, :, :], jnp.float32(-1e9), s)
    s_max = jnp.max(s, axis=-1, keepdims=True)
    e = jnp.exp(s - s_max)
    denom = jnp.sum(e, axis=-1, keepdims=True)
    attn = e * pl.reciprocal(denom, approx=True)
    ctx = jnp.einsum("hqk,hkd->hqd", attn.astype(v.dtype), v,
                     preferred_element_type=jnp.float32)
    ctx_ref[0] = ctx.astype(ctx_ref.dtype)
    attn_ref[0] = attn.astype(attn_ref.dtype)


def scaled_dot_product_attention(q, k, v, mask_i8, qkv_dim):
    """q,k,v: [B, H, L, dk]; mask_i8: [B, Lq, Lk] (1 == masked, not replicated
    per head).  All heads of one batch element are processed per grid step."""
    B, H, Lq, dk = q.shape
    Lk = k.shape[2]
    scale = 1.0 / float(np.sqrt(qkv_dim))
    qb, kb, vb = (t.astype(jnp.bfloat16) for t in (q, k, v))
    return pl.pallas_call(
        functools.partial(_attention_kernel, scale=scale),
        out_shape=(jax.ShapeDtypeStruct((B, H, Lq, dk), jnp.float32),
                   jax.ShapeDtypeStruct((B, H, Lq, Lk), jnp.float32)),
        grid=(B,),
        in_specs=[
            pl.BlockSpec((1, H, Lq, dk), lambda b: (b, 0, 0, 0)),
            pl.BlockSpec((1, H, Lk, dk), lambda b: (b, 0, 0, 0)),
            pl.BlockSpec((1, H, Lk, dk), lambda b: (b, 0, 0, 0)),
            pl.BlockSpec((1, Lq, Lk), lambda b: (b, 0, 0)),
        ],
        out_specs=(
            pl.BlockSpec((1, H, Lq, dk), lambda b: (b, 0, 0, 0)),
            pl.BlockSpec((1, H, Lq, Lk), lambda b: (b, 0, 0, 0)),
        ),
        compiler_params=pltpu.CompilerParams(dimension_semantics=("parallel",)),
    )(qb, kb, vb, mask_i8)


# ----------------------------------------------------------------------------
# Module wrappers (JAX glue around the Pallas kernels)
# ----------------------------------------------------------------------------
def multi_head_attention(p, q2d, kv2d, B, Lq, Lk, mask_i8, n_heads, qkv_dim):
    """Multi_Head_Attention: fused projections, head-batched attention kernel,
    W_O + residual + LayerNorm fused into the matmul epilogue."""
    H, dk = n_heads, qkv_dim
    HD = H * dk
    if "W_QKV" in p:                                  # self-attention: fused Q|K|V
        qkv = linear(q2d, p["W_QKV"], p["b_QKV"])
        q_s, k_s, v_s = qkv[:, :HD], qkv[:, HD:2 * HD], qkv[:, 2 * HD:]
    else:                                             # cross-attention: Q, fused K|V
        q_s = linear(q2d, p["W_Q"], p["b_Q"])
        kv = linear(kv2d, p["W_KV"], p["b_KV"])
        k_s, v_s = kv[:, :HD], kv[:, HD:]
    q_h = q_s.reshape(B, Lq, H, dk).transpose(0, 2, 1, 3)
    k_h = k_s.reshape(B, Lk, H, dk).transpose(0, 2, 1, 3)
    v_h = v_s.reshape(B, Lk, H, dk).transpose(0, 2, 1, 3)
    ctx, attn = scaled_dot_product_attention(q_h, k_h, v_h, mask_i8, dk)
    ctx2d = ctx.transpose(0, 2, 1, 3).reshape(B * Lq, HD)
    out2d = linear_res_ln(ctx2d, p["W_O"], p["b_O"], q2d, eps=1e-5)
    return out2d, attn


def local_rnn_layer(p, x):
    """SublayerConnection(x, LocalRNN): x + LocalRNN(LayerNorm(x)) -> [B*L, E]."""
    B, L, E = x.shape
    M = B * L
    x2d = x.reshape(M, E)
    g = ln_glu(x2d)                                   # custom LN (eps=1e-6) + GLU
    u = linear(g, p["W_conv"], p["b_conv"])           # Conv1d(kernel_size=1)
    up = jnp.concatenate(
        [jnp.zeros((B, KSIZE - 1, E), jnp.float32), u.reshape(B, L, E)], axis=1)
    # LSTM input at step t for output position l is conv_out[l - (KSIZE-1) + t]
    xs = jnp.concatenate(
        [up[:, t:t + L, :].reshape(M, E) for t in range(KSIZE)], axis=0)
    gx_all = linear(xs, p["W_ih"], p["b_ih"] + p["b_hh"])          # [KSIZE*M, 4E]
    h = jnp.zeros((M, E), jnp.float32)
    c = jnp.zeros((M, E), jnp.float32)
    for t in range(KSIZE):
        gx = gx_all[t * M:(t + 1) * M]
        gh = jnp.zeros((M, 4 * E), jnp.float32) if t == 0 else linear(h, p["W_hh"], None)
        h, c = lstm_cell(gx, gh, c)
    return x2d + h                                    # residual (dropout == identity)


def decoder_layer_forward(p, x, enc, attr, self_mask, enc_mask, attr_mask,
                          *, n_heads, qkv_dim):
    B, L, E = x.shape
    P, Ce = enc.shape[1], enc.shape[2]
    A, Ca = attr.shape[1], attr.shape[2]
    # LocalRNNLayer (GLU -> 1x1 conv -> windowed LSTM) with pre-norm residual
    x2d = local_rnn_layer(p["local_rnn"], x)
    # masked self-attention
    dec2d, self_attn = multi_head_attention(
        p["self_attn"], x2d, x2d, B, L, L, self_mask, n_heads, qkv_dim)
    # cross attention over image features / attribute features
    img2d, enc_attn = multi_head_attention(
        p["enc_attn"], dec2d, enc.reshape(B * P, Ce), B, L, P, enc_mask,
        n_heads, qkv_dim)
    attr2d, _ = multi_head_attention(
        p["att_attn"], dec2d, attr.reshape(B * A, Ca), B, L, A, attr_mask,
        n_heads, qkv_dim)
    # adaptive gate: fc(cat([img, img])) == img @ (W_fc[:E] + W_fc[E:]) + b (exact)
    ct = linear(img2d, p["W_fc_eff"], p["b_fc"], activation="sigmoid")
    gated = gate_ln(ct, img2d, attr2d)                # custom LayerNorm, eps=1e-6
    # position-wise FFN with fused residual + LayerNorm epilogue
    h1 = linear(gated, p["w_1"], p["b_1"], activation="relu")
    out2d = linear_res_ln(h1, p["w_2"], p["b_2"], gated, eps=1e-5)
    return out2d.reshape(B, L, E), self_attn, enc_attn


def decoder_forward(params, encoder_out, encoded_captions, caption_lengths,
                    attr_out, *, n_heads, qkv_dim):
    B, L = encoded_captions.shape
    E = params["tgt_emb"].shape[1]
    # sort batch by decreasing caption length (as in the reference)
    lengths = caption_lengths.reshape(B)
    sort_ind = jnp.argsort(-lengths)
    lengths = lengths[sort_ind]
    encoder_out = encoder_out[sort_ind]
    encoded_captions = encoded_captions[sort_ind]
    attr_out = attr_out[sort_ind]
    decode_lengths = lengths - 1

    # token + position embeddings (dropout == identity)
    x = jnp.take(params["tgt_emb"], encoded_captions, axis=0) + params["pos_emb"][None, :L]

    # masks (1 == masked); pad + causal for self-attn, all-visible for the others
    pad = jnp.broadcast_to((encoded_captions == 0)[:, None, :], (B, L, L))
    causal = jnp.triu(jnp.ones((L, L), jnp.int32), k=1)[None]
    self_mask = ((pad.astype(jnp.int32) + causal) > 0).astype(jnp.int8)
    enc_mask = jnp.zeros((B, L, encoder_out.shape[1]), jnp.int8)
    attr_mask = jnp.zeros((B, L, attr_out.shape[1]), jnp.int8)

    self_attns, enc_attns = [], []
    for lp in params["layers"]:
        x, sa, ea = decoder_layer_forward(lp, x, encoder_out, attr_out,
                                          self_mask, enc_mask, attr_mask,
                                          n_heads=n_heads, qkv_dim=qkv_dim)
        self_attns.append(sa)
        enc_attns.append(ea)

    preds = linear(x.reshape(B * L, E), params["W_proj"], None).reshape(B, L, -1)
    return preds, encoded_captions, decode_lengths, sort_ind, self_attns, enc_attns


# ----------------------------------------------------------------------------
# Deterministic synthetic parameters (shapes follow the PyTorch __init__)
# ----------------------------------------------------------------------------
def _w(key, fan_in, fan_out, scale=0.02):
    return (scale * jax.random.normal(key, (fan_in, fan_out))).astype(jnp.float32)


def _zeros(n):
    return jnp.zeros((n,), jnp.float32)


def sinusoid_table(max_len, E):
    pos = np.arange(max_len)[:, None].astype(np.float64)
    idx = np.arange(E)[None, :]
    angle = pos / np.power(10000.0, 2.0 * (idx // 2) / E)
    tab = np.zeros((max_len, E), np.float64)
    tab[:, 0::2] = np.sin(angle[:, 0::2])
    tab[:, 1::2] = np.cos(angle[:, 1::2])
    return jnp.asarray(tab, dtype=jnp.float32)


def init_layer_params(key, E, H, dk, enc_dim, attr_dim, d_ff):
    HD = H * dk
    k = iter(jax.random.split(key, 14))
    local = {
        "W_conv": _w(next(k), E // 2, E), "b_conv": _zeros(E),
        "W_ih": _w(next(k), E, 4 * E), "b_ih": _zeros(4 * E),
        "W_hh": _w(next(k), E, 4 * E), "b_hh": _zeros(4 * E),
    }
    self_attn = {
        "W_QKV": _w(next(k), E, 3 * HD), "b_QKV": _zeros(3 * HD),
        "W_O": _w(next(k), HD, E), "b_O": _zeros(E),
    }
    enc_attn = {
        "W_Q": _w(next(k), E, HD), "b_Q": _zeros(HD),
        "W_KV": _w(next(k), enc_dim, 2 * HD), "b_KV": _zeros(2 * HD),
        "W_O": _w(next(k), HD, E), "b_O": _zeros(E),
    }
    att_attn = {
        "W_Q": _w(next(k), E, HD), "b_Q": _zeros(HD),
        "W_KV": _w(next(k), attr_dim, 2 * HD), "b_KV": _zeros(2 * HD),
        "W_O": _w(next(k), HD, E), "b_O": _zeros(E),
    }
    W_fc = _w(next(k), 2 * E, E)
    return {
        "local_rnn": local,
        "self_attn": self_attn,
        "enc_attn": enc_attn,
        "att_attn": att_attn,
        "W_fc_eff": W_fc[:E] + W_fc[E:],   # fc(cat([img, img])) folded exactly
        "b_fc": _zeros(E),
        "w_1": _w(next(k), E, d_ff), "b_1": _zeros(d_ff),
        "w_2": _w(next(k), d_ff, E), "b_2": _zeros(E),
    }


def init_params(key, *, vocab, E, H, dk, enc_dim, attr_dim, d_ff, n_layers, max_len):
    keys = jax.random.split(key, n_layers + 2)
    emb = 0.02 * jax.random.normal(keys[0], (vocab, E), dtype=jnp.float32)
    emb = emb.at[0].set(0.0)                           # padding_idx = 0
    return {
        "tgt_emb": emb,
        "pos_emb": sinusoid_table(max_len, E),
        "W_proj": _w(keys[1], E, vocab),               # projection, bias=False
        "layers": [init_layer_params(keys[2 + i], E, H, dk, enc_dim, attr_dim, d_ff)
                   for i in range(n_layers)],
    }


if __name__ == "__main__":
    # Scaled-down config (reference: embed_dim=512, QKVdim=64, n_heads=8,
    # 196 image pixels x 2048, 7 attributes x 300, d_ff=2048, max_len=27).
    B = 2
    MAX_LEN = 32
    EMBED = 256
    HEADS = 2
    QKV_DIM = 64
    ENC_P, ENC_D = 32, 256  # TODO(synk): the reference declares K_dim=4096 for the
                            # image attention but documents 2048-d encoder features;
                            # here the encoder feature dim and K_dim are kept equal.
    ATTR_A, ATTR_D = 8, 128
    D_FF = 512
    VOCAB = 512
    N_LAYERS = 2

    key = jax.random.PRNGKey(0)
    kp, ke, ka, kc = jax.random.split(key, 4)
    params = init_params(kp, vocab=VOCAB, E=EMBED, H=HEADS, dk=QKV_DIM,
                         enc_dim=ENC_D, attr_dim=ATTR_D, d_ff=D_FF,
                         n_layers=N_LAYERS, max_len=MAX_LEN)

    encoder_out = jax.random.normal(ke, (B, ENC_P, ENC_D), dtype=jnp.float32)
    attr_out = jax.random.normal(ka, (B, ATTR_A, ATTR_D), dtype=jnp.float32)
    caption_lengths = jnp.array([[20], [32]], dtype=jnp.int32)
    caps = jax.random.randint(kc, (B, MAX_LEN), 1, VOCAB, dtype=jnp.int32)
    caps = jnp.where(jnp.arange(MAX_LEN)[None, :] < caption_lengths, caps, 0)

    preds, enc_caps, dec_lens, sort_ind, self_attns, enc_attns = decoder_forward(
        params, encoder_out, caps, caption_lengths, attr_out,
        n_heads=HEADS, qkv_dim=QKV_DIM)
    jax.block_until_ready((preds, self_attns, enc_attns))

    assert preds.shape == (B, MAX_LEN, VOCAB)
    assert self_attns[0].shape == (B, HEADS, MAX_LEN, MAX_LEN)
    assert enc_attns[0].shape == (B, HEADS, MAX_LEN, ENC_P)
    assert bool(jnp.all(jnp.isfinite(preds)))
    print("KERNEL_OK")
</pallas_src>

<mosaic_0001>
module attributes {stable_mosaic.version = 11 : i64} {
  func.func @_ln_glu_kernel(%arg0: i32, %arg1: memref<64x256xf32, #tpu.memory_space<vmem>>, %arg2: memref<64x128xf32, #tpu.memory_space<vmem>>) attributes {dimension_semantics = [#tpu.dimension_semantics<parallel>], iteration_bounds = array<i64: 1>, scalar_prefetch = 0 : i64, scratch_operands = 0 : i64, tpu.core_type = #tpu.core_type<tc>, window_params = [{transform_indices = @transform_0, window_bounds = array<i64: 64, 256>}, {transform_indices = @transform_1, window_bounds = array<i64: 64, 128>}]} {
    %c0 = arith.constant 0 : index
    %c0_0 = arith.constant 0 : index
    %0 = vector.load %arg1[%c0, %c0_0] : memref<64x256xf32, #tpu.memory_space<vmem>>, vector<64x256xf32>
    %cst = arith.constant dense<0.000000e+00> : vector<64xf32>
    %1 = vector.multi_reduction <add>, %0, %cst [1] : vector<64x256xf32> to vector<64xf32>
    %2 = vector.shape_cast %1 : vector<64xf32> to vector<64x1xf32>
    %cst_1 = arith.constant 2.560000e+02 : f32
    %3 = vector.broadcast %cst_1 : f32 to vector<64x1xf32>
    %4 = arith.divf %2, %3 : vector<64x1xf32>
    %5 = vector.broadcast %4 : vector<64x1xf32> to vector<64x256xf32>
    %6 = arith.subf %0, %5 : vector<64x256xf32>
    %7 = arith.mulf %6, %6 : vector<64x256xf32>
    %cst_2 = arith.constant dense<0.000000e+00> : vector<64xf32>
    %8 = vector.multi_reduction <add>, %7, %cst_2 [1] : vector<64x256xf32> to vector<64xf32>
    %9 = vector.shape_cast %8 : vector<64xf32> to vector<64x1xf32>
    %cst_3 = arith.constant 2.550000e+02 : f32
    %10 = vector.broadcast %cst_3 : f32 to vector<64x1xf32>
    %11 = arith.divf %9, %10 : vector<64x1xf32>
    %12 = math.sqrt %11 : vector<64x1xf32>
    %cst_4 = arith.constant 9.99999997E-7 : f32
    %13 = vector.broadcast %cst_4 : f32 to vector<64x1xf32>
    %14 = arith.addf %12, %13 : vector<64x1xf32>
    %15 = vector.broadcast %14 : vector<64x1xf32> to vector<64x256xf32>
    %16 = arith.divf %6, %15 : vector<64x256xf32>
    %17 = vector.extract_strided_slice %16 {offsets = [0, 0], sizes = [64, 128], strides = [1, 1]} : vector<64x256xf32> to vector<64x128xf32>
    %18 = vector.extract_strided_slice %16 {offsets = [0, 128], sizes = [64, 128], strides = [1, 1]} : vector<64x256xf32> to vector<64x128xf32>
    %19 = arith.negf %18 : vector<64x128xf32>
    %20 = math.exp %19 : vector<64x128xf32>
    %cst_5 = arith.constant 1.000000e+00 : f32
    %21 = vector.broadcast %cst_5 : f32 to vector<64x128xf32>
    %22 = arith.addf %21, %20 : vector<64x128xf32>
    %23 = arith.divf %21, %22 : vector<64x128xf32>
    %24 = arith.mulf %17, %23 : vector<64x128xf32>
    %c0_6 = arith.constant 0 : index
    %c0_7 = arith.constant 0 : index
    %25 = vector.load %arg2[%c0_6, %c0_7] : memref<64x128xf32, #tpu.memory_space<vmem>>, vector<64x128xf32>
    tpu.vector_store %arg2[%c0_6, %c0_7], %24 {strides = array<i32>} : memref<64x128xf32, #tpu.memory_space<vmem>>, vector<64x128xf32>,
    return
  }
  func.func @transform_0(%arg0: i32) -> (i32, i32) {
    %c0_i32 = arith.constant 0 : i32
    %c0_i32_0 = arith.constant 0 : i32
    return %arg0, %c0_i32 : i32, i32
  }
  func.func @transform_1(%arg0: i32) -> (i32, i32) {
    %c0_i32 = arith.constant 0 : i32
    %c0_i32_0 = arith.constant 0 : i32
    return %arg0, %c0_i32 : i32, i32
  }
}

</mosaic_0001>

<llo_original>
// kernel: tpu_custom_call.1
$region0: #{tpu_custom_call.1}
  #allocation0 [shape = 'u32[]', space=smem, size = 0x4, offset = 0x4, fixed_abs, tag = 'smem constant byte address 0x4 - core index']
  #allocation1 [shape = 'u32[144,128]{1,0:T(1,128)}', space=vmem, size = 0x12000, scoped, tag = 'internal scratch']
  %s0 = inlined_call_operand.hbm [shape: f32[64,256], index: 0, kind: input, shape index: {}]
  %s1 = inlined_call_operand.hbm [shape: f32[64,128], index: 1, kind: output, shape index: {}]
  %s2 = sld [smem:[#allocation0]]
  $region18: #{tpu_custom_call.1} parent=0
    _
  %s4 = ssub.s32 1, %s2
  %s5 = scalar_select 0, %s4, %s2
  $region1: #{tpu_custom_call.1} parent=0
    #allocation2 [shape = 'u8[65536]{0}', space=vmem, size = 0x10000, scoped, tag = 'input window, operand 0, single buffered']
    #allocation3 [shape = 's32[1]{0}', space=sflag, size = 0x4, scoped, tag = 'scoped memory for tpu_custom_call.1']
    #allocation4 [shape = 's32[1]{0}', space=sflag, size = 0x4, scoped, tag = 'scoped memory for tpu_custom_call.1']
    #allocation5 [shape = 'u8[32768]{0}', space=vmem, size = 0x8000, scoped, tag = 'output window, operand 0, single buffered']
    %6 = vsyncpa [#allocation3], 0
    %7 = vsyncpa [#allocation4], 0
    // Predicated region
    $region2: #{tpu_custom_call.1} parent=1 // pred_check
      _
    $region3: #{tpu_custom_call.1} parent=1 // pred_check_branch
      %9 = sbr.rel (0) target = $region5
    $region4: #{tpu_custom_call.1} parent=1 // pred_region
      %s11 = ssub.s32 2048, 2048
      %12 = vsyncadd [#allocation3], %s11
      %s13 = sshll.u32 [#allocation2], 4
      %s14 = int_to_ptr.vmem [resolvable:$true] %s13
      %19 = dma.hbm_to_vmem [thread:$0]  %s0, 2048, %s14, [#allocation3], 256, 256, 16
    $region5: #{tpu_custom_call.1} parent=1 // pred_fallthru
      _
    // Predicated region
    $region6: #{tpu_custom_call.1} parent=1 // pred_check
      _
    $region7: #{tpu_custom_call.1} parent=1 // pred_check_branch
      %21 = sbr.rel (0) target = $region9
    $region8: #{tpu_custom_call.1} parent=1 // pred_region
      %22 = dma.done [#allocation3], 2048
    $region9: #{tpu_custom_call.1} parent=1 // pred_fallthru
      _
    %v23 = vld [vmem:[#allocation2] sm:$0xff]
    %v24 = vld [vmem:[#allocation2 + $0x8] sm:$0xff]
    %v25 = vld [vmem:[#allocation2 + $0x10] sm:$0xff]
    %v26 = vld [vmem:[#allocation2 + $0x18] sm:$0xff]
    %v27 = vld [vmem:[#allocation2 + $0x20] sm:$0xff]
    %v28 = vld [vmem:[#allocation2 + $0x28] sm:$0xff]
    %v29 = vld [vmem:[#allocation2 + $0x30] sm:$0xff]
    %v30 = vld [vmem:[#allocation2 + $0x38] sm:$0xff]
    %v31 = vld [vmem:[#allocation2 + $0x40] sm:$0xff]
    %v32 = vld [vmem:[#allocation2 + $0x48] sm:$0xff]
    %v33 = vld [vmem:[#allocation2 + $0x50] sm:$0xff]
    %v34 = vld [vmem:[#allocation2 + $0x58] sm:$0xff]
    %v35 = vld [vmem:[#allocation2 + $0x60] sm:$0xff]
    %v36 = vld [vmem:[#allocation2 + $0x68] sm:$0xff]
    %v37 = vld [vmem:[#allocation2 + $0x70] sm:$0xff]
    %v38 = vld [vmem:[#allocation2 + $0x78] sm:$0xff]
    %v39 = vadd.f32 %v23, %v24
    %40 = vadd.xlane.f32.xlu0 %v39
    %v41 = vpop.xlane.xlu0 %40
    %v42 = vadd.f32 %v25, %v26
    %43 = vadd.xlane.f32.xlu0 %v42
    %v44 = vpop.xlane.xlu0 %43
    %v45 = vadd.f32 %v27, %v28
    %46 = vadd.xlane.f32.xlu0 %v45
    %v47 = vpop.xlane.xlu0 %46
    %v48 = vadd.f32 %v29, %v30
    %49 = vadd.xlane.f32.xlu0 %v48
    %v50 = vpop.xlane.xlu0 %49
    %v51 = vadd.f32 %v31, %v32
    %52 = vadd.xlane.f32.xlu0 %v51
    %v53 = vpop.xlane.xlu0 %52
    %v54 = vadd.f32 %v33, %v34
    %55 = vadd.xlane.f32.xlu0 %v54
    %v56 = vpop.xlane.xlu0 %55
    %v57 = vadd.f32 %v35, %v36
    %58 = vadd.xlane.f32.xlu0 %v57
    %v59 = vpop.xlane.xlu0 %58
    %v60 = vadd.f32 %v37, %v38
    %61 = vadd.xlane.f32.xlu0 %v60
    %v62 = vpop.xlane.xlu0 %61
    %v63 = vrcp.pop 256.0
    %v64 = vmul.f32 %v41, %v63
    %v65 = vmul.f32 %v44, %v63
    %v66 = vmul.f32 %v47, %v63
    %v67 = vmul.f32 %v50, %v63
    %v68 = vmul.f32 %v53, %v63
    %v69 = vmul.f32 %v56, %v63
    %v70 = vmul.f32 %v59, %v63
    %v71 = vmul.f32 %v62, %v63
    %v72 = vsub.f32 %v23, %v64
    %v73 = vsub.f32 %v24, %v64
    %v74 = vsub.f32 %v25, %v65
    %v75 = vsub.f32 %v26, %v65
    %v76 = vsub.f32 %v27, %v66
    %v77 = vsub.f32 %v28, %v66
    %v78 = vsub.f32 %v29, %v67
    %v79 = vsub.f32 %v30, %v67
    %v80 = vsub.f32 %v31, %v68
    %v81 = vsub.f32 %v32, %v68
    %v82 = vsub.f32 %v33, %v69
    %v83 = vsub.f32 %v34, %v69
    %v84 = vsub.f32 %v35, %v70
    %v85 = vsub.f32 %v36, %v70
    %v86 = vsub.f32 %v37, %v71
    %v87 = vsub.f32 %v38, %v71
    %v88 = vmul.f32 %v72, %v72
    %v89 = vmul.f32 %v73, %v73
    %v90 = vmul.f32 %v74, %v74
    %v91 = vmul.f32 %v75, %v75
    %v92 = vmul.f32 %v76, %v76
    %v93 = vmul.f32 %v77, %v77
    %v94 = vmul.f32 %v78, %v78
    %v95 = vmul.f32 %v79, %v79
    %v96 = vmul.f32 %v80, %v80
    %v97 = vmul.f32 %v81, %v81
    %v98 = vmul.f32 %v82, %v82
    %v99 = vmul.f32 %v83, %v83
    %v100 = vmul.f32 %v84, %v84
    %v101 = vmul.f32 %v85, %v85
    %v102 = vmul.f32 %v86, %v86
    %v103 = vmul.f32 %v87, %v87
    %v104 = vadd.f32 %v88, %v89
    %105 = vadd.xlane.f32.xlu0 %v104
    %v106 = vpop.xlane.xlu0 %105
    %v107 = vadd.f32 %v90, %v91
    %108 = vadd.xlane.f32.xlu0 %v107
    %v109 = vpop.xlane.xlu0 %108
    %v110 = vadd.f32 %v92, %v93
    %111 = vadd.xlane.f32.xlu0 %v110
    %v112 = vpop.xlane.xlu0 %111
    %v113 = vadd.f32 %v94, %v95
    %114 = vadd.xlane.f32.xlu0 %v113
    %v115 = vpop.xlane.xlu0 %114
    %v116 = vadd.f32 %v96, %v97
    %117 = vadd.xlane.f32.xlu0 %v116
    %v118 = vpop.xlane.xlu0 %117
    %v119 = vadd.f32 %v98, %v99
    %120 = vadd.xlane.f32.xlu0 %v119
    %v121 = vpop.xlane.xlu0 %120
    %v122 = vadd.f32 %v100, %v101
    %123 = vadd.xlane.f32.xlu0 %v122
    %v124 = vpop.xlane.xlu0 %123
    %v125 = vadd.f32 %v102, %v103
    %126 = vadd.xlane.f32.xlu0 %v125
    %v127 = vpop.xlane.xlu0 %126
    %v128 = vrcp.pop 255.0
    %v129 = vmul.f32 %v106, %v128
    %v130 = vmul.f32 %v109, %v128
    %v131 = vmul.f32 %v112, %v128
    %v132 = vmul.f32 %v115, %v128
    %v133 = vmul.f32 %v118, %v128
    %v134 = vmul.f32 %v121, %v128
    %v135 = vmul.f32 %v124, %v128
    %v136 = vmul.f32 %v127, %v128
    %v137 = vrsqrt.pop %v129
    %v138 = vmul.f32 %v129, %v137
    %vm139 = vcmp.eq.f32.partialorder %v129, inf
    %v140 = vsel %vm139, %v129, %v138
    %vm141 = vcmp.eq.f32.partialorder %v129, 0.0
    %v142 = vand.u32 %v129, 2147483648
    %v143 = vsel %vm141, %v142, %v140
    %v144 = vrsqrt.pop %v130
    %v145 = vmul.f32 %v130, %v144
    %vm146 = vcmp.eq.f32.partialorder %v130, inf
    %v147 = vsel %vm146, %v130, %v145
    %vm148 = vcmp.eq.f32.partialorder %v130, 0.0
    %v149 = vand.u32 %v130, 2147483648
    %v150 = vsel %vm148, %v149, %v147
    %v151 = vrsqrt.pop %v131
    %v152 = vmul.f32 %v131, %v151
    %vm153 = vcmp.eq.f32.partialorder %v131, inf
    %v154 = vsel %vm153, %v131, %v152
    %vm155 = vcmp.eq.f32.partialorder %v131, 0.0
    %v156 = vand.u32 %v131, 2147483648
    %v157 = vsel %vm155, %v156, %v154
    %v158 = vrsqrt.pop %v132
    %v159 = vmul.f32 %v132, %v158
    %vm160 = vcmp.eq.f32.partialorder %v132, inf
    %v161 = vsel %vm160, %v132, %v159
    %vm162 = vcmp.eq.f32.partialorder %v132, 0.0
    %v163 = vand.u32 %v132, 2147483648
    %v164 = vsel %vm162, %v163, %v161
    %v165 = vrsqrt.pop %v133
    %v166 = vmul.f32 %v133, %v165
    %vm167 = vcmp.eq.f32.partialorder %v133, inf
    %v168 = vsel %vm167, %v133, %v166
    %vm169 = vcmp.eq.f32.partialorder %v133, 0.0
    %v170 = vand.u32 %v133, 2147483648
    %v171 = vsel %vm169, %v170, %v168
    %v172 = vrsqrt.pop %v134
    %v173 = vmul.f32 %v134, %v172
    %vm174 = vcmp.eq.f32.partialorder %v134, inf
    %v175 = vsel %vm174, %v134, %v173
    %vm176 = vcmp.eq.f32.partialorder %v134, 0.0
    %v177 = vand.u32 %v134, 2147483648
    %v178 = vsel %vm176, %v177, %v175
    %v179 = vrsqrt.pop %v135
    %v180 = vmul.f32 %v135, %v179
    %vm181 = vcmp.eq.f32.partialorder %v135, inf
    %v182 = vsel %vm181, %v135, %v180
    %vm183 = vcmp.eq.f32.partialorder %v135, 0.0
    %v184 = vand.u32 %v135, 2147483648
    %v185 = vsel %vm183, %v184, %v182
    %v186 = vrsqrt.pop %v136
    %v187 = vmul.f32 %v136, %v186
    %vm188 = vcmp.eq.f32.partialorder %v136, inf
    %v189 = vsel %vm188, %v136, %v187
    %vm190 = vcmp.eq.f32.partialorder %v136, 0.0
    %v191 = vand.u32 %v136, 2147483648
    %v192 = vsel %vm190, %v191, %v189
    %v193 = vadd.f32 %v143, 1e-06
    %v194 = vadd.f32 %v150, 1e-06
    %v195 = vadd.f32 %v157, 1e-06
    %v196 = vadd.f32 %v164, 1e-06
    %v197 = vadd.f32 %v171, 1e-06
    %v198 = vadd.f32 %v178, 1e-06
    %v199 = vadd.f32 %v185, 1e-06
    %v200 = vadd.f32 %v192, 1e-06
    %v201 = vrcp.pop %v193
    %v202 = vmul.f32 %v72, %v201
    %v203 = vmul.f32 %v73, %v201
    %v204 = vrcp.pop %v194
    %v205 = vmul.f32 %v74, %v204
    %v206 = vmul.f32 %v75, %v204
    %v207 = vrcp.pop %v195
    %v208 = vmul.f32 %v76, %v207
    %v209 = vmul.f32 %v77, %v207
    %v210 = vrcp.pop %v196
    %v211 = vmul.f32 %v78, %v210
    %v212 = vmul.f32 %v79, %v210
    %v213 = vrcp.pop %v197
    %v214 = vmul.f32 %v80, %v213
    %v215 = vmul.f32 %v81, %v213
    %v216 = vrcp.pop %v198
    %v217 = vmul.f32 %v82, %v216
    %v218 = vmul.f32 %v83, %v216
    %v219 = vrcp.pop %v199
    %v220 = vmul.f32 %v84, %v219
    %v221 = vmul.f32 %v85, %v219
    %v222 = vrcp.pop %v200
    %v223 = vmul.f32 %v86, %v222
    %v224 = vmul.f32 %v87, %v222
    %v225 = vxor.u32 %v203, 2147483648
    %v226 = vxor.u32 %v206, 2147483648
    %v227 = vxor.u32 %v209, 2147483648
    %v228 = vxor.u32 %v212, 2147483648
    %v229 = vxor.u32 %v215, 2147483648
    %v230 = vxor.u32 %v218, 2147483648
    %v231 = vxor.u32 %v221, 2147483648
    %v232 = vxor.u32 %v224, 2147483648
    %v233 = vmul.f32 %v225, 1.442695
    %v234 = vpow.pop %v233
    %v235 = vmul.f32 %v226, 1.442695
    %v236 = vpow.pop %v235
    %v237 = vmul.f32 %v227, 1.442695
    %v238 = vpow.pop %v237
    %v239 = vmul.f32 %v228, 1.442695
    %v240 = vpow.pop %v239
    %v241 = vmul.f32 %v229, 1.442695
    %v242 = vpow.pop %v241
    %v243 = vmul.f32 %v230, 1.442695
    %v244 = vpow.pop %v243
    %v245 = vmul.f32 %v231, 1.442695
    %v246 = vpow.pop %v245
    %v247 = vmul.f32 %v232, 1.442695
    %v248 = vpow.pop %v247
    %v249 = vadd.f32 %v234, 1.0
    %v250 = vadd.f32 %v236, 1.0
    %v251 = vadd.f32 %v238, 1.0
    %v252 = vadd.f32 %v240, 1.0
    %v253 = vadd.f32 %v242, 1.0
    %v254 = vadd.f32 %v244, 1.0
    %v255 = vadd.f32 %v246, 1.0
    %v256 = vadd.f32 %v248, 1.0
    %v257 = vrcp.pop %v249
    %v258 = vmul.f32 1.0, %v257
    %v259 = vrcp.pop %v250
    %v260 = vmul.f32 1.0, %v259
    %v261 = vrcp.pop %v251
    %v262 = vmul.f32 1.0, %v261
    %v263 = vrcp.pop %v252
    %v264 = vmul.f32 1.0, %v263
    %v265 = vrcp.pop %v253
    %v266 = vmul.f32 1.0, %v265
    %v267 = vrcp.pop %v254
    %v268 = vmul.f32 1.0, %v267
    %v269 = vrcp.pop %v255
    %v270 = vmul.f32 1.0, %v269
    %v271 = vrcp.pop %v256
    %v272 = vmul.f32 1.0, %v271
    %v273 = vmul.f32 %v202, %v258
    %v274 = vmul.f32 %v205, %v260
    %v275 = vmul.f32 %v208, %v262
    %v276 = vmul.f32 %v211, %v264
    %v277 = vmul.f32 %v214, %v266
    %v278 = vmul.f32 %v217, %v268
    %v279 = vmul.f32 %v220, %v270
    %v280 = vmul.f32 %v223, %v272
    %281 = vst [vmem:[#allocation5] sm:$0xff] %v273
    %282 = vst [vmem:[#allocation5 + $0x8] sm:$0xff] %v274
    %283 = vst [vmem:[#allocation5 + $0x10] sm:$0xff] %v275
    %284 = vst [vmem:[#allocation5 + $0x18] sm:$0xff] %v276
    %285 = vst [vmem:[#allocation5 + $0x20] sm:$0xff] %v277
    %286 = vst [vmem:[#allocation5 + $0x28] sm:$0xff] %v278
    %287 = vst [vmem:[#allocation5 + $0x30] sm:$0xff] %v279
    %288 = vst [vmem:[#allocation5 + $0x38] sm:$0xff] %v280
    // Predicated region
    $region10: #{tpu_custom_call.1} parent=1 // pred_check
      _
    $region11: #{tpu_custom_call.1} parent=1 // pred_check_branch
      %290 = sbr.rel (0) target = $region13
    $region12: #{tpu_custom_call.1} parent=1 // pred_region
      %s292 = ssub.s32 1024, 1024
      %293 = vsyncadd [#allocation4], %s292
      %s294 = sshll.u32 [#allocation5], 4
      %s295 = int_to_ptr.vmem [resolvable:$true] %s294
      %300 = dma.vmem_to_hbm [thread:$0]  %s295, 1024, %s1, [#allocation4], 128, 128, 8
    $region13: #{tpu_custom_call.1} parent=1 // pred_fallthru
      _
    // Predicated region
    $region14: #{tpu_custom_call.1} parent=1 // pred_check
      _
    $region15: #{tpu_custom_call.1} parent=1 // pred_check_branch
      %302 = sbr.rel (0) target = $region17
    $region16: #{tpu_custom_call.1} parent=1 // pred_region
      %303 = dma.done [#allocation4], 1024
    $region17: #{tpu_custom_call.1} parent=1 // pred_fallthru
      _
    %304 = vsyncpa [#allocation3], 1
    %305 = vsyncpa [#allocation4], 1

</llo_original>
